<compile_context>
chip_gen: v6e
topology: v6e:2x2x1
jax: 0.10.0
libtpu: 0.0.40
codegen_flags: <defaults>
</compile_context>

<pallas_src>
import functools

import jax
import jax.numpy as jnp
from jax.experimental import pallas as pl
from jax.experimental.pallas import tpu as pltpu

GAMMA = 2.0
ALPHA = 1.0

# Scoped-VMEM ceiling for every pallas_call: 48 MiB fits v7x's 64 MiB physical
# VMEM with headroom and is far below v5e/v6e's 128 MiB.
_VMEM_LIMIT = 48 * 1024 * 1024

# Default two-pass tile: 1024 rows x 512 lanes (2 MiB per f32 buffer).  Three
# streams x double-buffering ~= 12 MiB resident -> safe on all generations.
_DEFAULT_BLOCK_ELEMS = 1024 * 512

# Fused fast path: whole slab as one block.  256K f32 elements keeps inputs,
# output and elementwise temporaries well under the VMEM budget everywhere.
_DEFAULT_FUSED_ELEMS = 256 * 1024


def _pick_lanes(n):
    """Largest lane width in {512,256,128} dividing n (=> no padding), else 128."""
    for lanes in (512, 256, 128):
        if n % lanes == 0:
            return lanes
    return 128


def _focal_modulator(d, gamma):
    """|d| ** gamma; integer exponents lower to VPU multiplies (no EUP pow)."""
    g = float(gamma)
    if g == 2.0:
        return d * d                       # |d|^2 == d^2, one VPU mul
    if g.is_integer() and g >= 0:
        return jnp.abs(d) ** int(g)        # lax.integer_pow -> repeated multiply
    return jnp.power(jnp.abs(d), g)        # general case: exp/log on the EUP


def _bce_and_modulator(x_raw, t_raw, gamma):
    """Numerically-stable BCE-with-logits + focal modulator sharing one exp(-|x|)."""
    x = x_raw.astype(jnp.float32)          # f32 compute (mandatory on v5e)
    t = t_raw.astype(jnp.float32)
    e = jnp.exp(-jnp.abs(x))
    # PyTorch's stable formula: max(x,0) - x*t + log(1 + exp(-|x|))
    bce = jnp.maximum(x, 0.0) - x * t + jnp.log1p(e)
    # sigmoid(x) = where(x >= 0, 1, e) / (1 + e).  Full-precision divide: both
    # passes are HBM-bound, so the extra precision vs. an approx vrcp is free.
    p = jnp.where(x >= 0.0, 1.0, e) / (1.0 + e)
    return bce, _focal_modulator(t - p, gamma)


# --------------------------------------------------------------------------- #
# Kernels
# --------------------------------------------------------------------------- #
def _fused_kernel(x_ref, t_ref, o_ref, *, n_real, rows, lanes, needs_mask,
                  gamma, alpha):
    """Single-block path: BCE sum + final output in one invocation."""
    bce, mod = _bce_and_modulator(x_ref[...], t_ref[...], gamma)
    if needs_mask:
        row = jax.lax.broadcasted_iota(jnp.int32, (rows, lanes), 0)
        lane = jax.lax.broadcasted_iota(jnp.int32, (rows, lanes), 1)
        bce = jnp.where(row * lanes + lane < n_real, bce, 0.0)
    scale = jnp.sum(bce) * (alpha / n_real)     # mean + alpha folded together
    o_ref[...] = (mod * scale).astype(o_ref.dtype)


def _pass1_kernel(x_ref, t_ref, mod_ref, psum_ref, *, n_real, tile_rows, lanes,
                  tiles_per_chunk, needs_mask, gamma):
    """Tiled pass 1: write modulator slab, accumulate per-chunk BCE partials."""
    c = pl.program_id(0)   # chunk ("parallel": shards across TCs where present)
    i = pl.program_id(1)   # tile within chunk ("arbitrary": reduction axis)

    bce, mod = _bce_and_modulator(x_ref[...], t_ref[...], gamma)
    mod_ref[...] = mod.astype(mod_ref.dtype)

    @pl.when(i == 0)
    def _init():
        psum_ref[...] = jnp.zeros_like(psum_ref)

    if needs_mask:
        tile_elems = tile_rows * lanes
        tile_start = (c * tiles_per_chunk + i) * tile_elems
        tile_is_clean = tile_start + tile_elems <= n_real

        @pl.when(tile_is_clean)
        def _sum_clean():
            # Interior tiles: no mask arithmetic at all.
            psum_ref[...] += jnp.sum(bce)

        @pl.when(jnp.logical_not(tile_is_clean))
        def _sum_masked():
            # Only the single tile straddling the end pays the iota/select cost.
            row = jax.lax.broadcasted_iota(jnp.int32, (tile_rows, lanes), 0)
            lane = jax.lax.broadcasted_iota(jnp.int32, (tile_rows, lanes), 1)
            flat = tile_start + row * lanes + lane
            psum_ref[...] += jnp.sum(jnp.where(flat < n_real, bce, 0.0))
    else:
        psum_ref[...] += jnp.sum(bce)


def _pass2_kernel(scale_ref, mod_ref, o_ref):
    """One VPU multiply + store per vreg; scale is a (1,1) f32 broadcast."""
    o_ref[...] = (mod_ref[...] * scale_ref[...]).astype(o_ref.dtype)


# --------------------------------------------------------------------------- #
# Wrapper
# --------------------------------------------------------------------------- #
@functools.partial(
    jax.jit,
    static_argnames=("block_elems", "fused_max_elems", "force_two_pass",
                     "target_bf16"))
def focal_loss(x, target, *, block_elems=_DEFAULT_BLOCK_ELEMS,
               fused_max_elems=_DEFAULT_FUSED_ELEMS,
               force_two_pass=False, target_bf16=False):
    """Pallas FocalLoss forward.  x/target: identical shapes; returns x's shape/dtype."""
    assert x.shape == target.shape
    orig_shape, orig_dtype = x.shape, x.dtype
    n = x.size
    assert n > 0

    xf = x.reshape(-1)
    tf = target.reshape(-1)
    if target_bf16:
        # Halves the target HBM stream (exact for 0/1 YOLO targets).  Off by
        # default so soft / float targets keep exact f32 semantics.
        tf = tf.astype(jnp.bfloat16)

    # Lane-dense 2D layout [rows, lanes].  lanes is chosen to divide n whenever
    # possible so no padding (and no de-pad slice) is ever materialized;
    # otherwise pad only to the next lane multiple (< 128 elements of pad) and
    # mask the tail out of the BCE sum in-kernel.  Rows are never padded: the
    # last grid block may overrun and Pallas drops its out-of-bounds writes.
    lanes = _pick_lanes(n)
    rows = pl.cdiv(n, lanes)
    pad = rows * lanes - n
    if pad:
        xf = jnp.pad(xf, (0, pad))
        tf = jnp.pad(tf, (0, pad))
    x2 = xf.reshape(rows, lanes)
    t2 = tf.reshape(rows, lanes)

    # ---------------- Fused single-block fast path ---------------- #
    if rows * lanes <= fused_max_elems and not force_two_pass:
        full_spec = pl.BlockSpec((rows, lanes), lambda i: (0, 0))
        kernel = functools.partial(
            _fused_kernel, n_real=n, rows=rows, lanes=lanes,
            needs_mask=(pad != 0), gamma=GAMMA, alpha=ALPHA)
        out2 = pl.pallas_call(
            kernel,
            out_shape=jax.ShapeDtypeStruct((rows, lanes), orig_dtype),
            grid_spec=pltpu.PrefetchScalarGridSpec(
                num_scalar_prefetch=0, grid=(1,),
                in_specs=[full_spec, full_spec],
                out_specs=full_spec),
            compiler_params=pltpu.CompilerParams(
                dimension_semantics=("arbitrary",),
                vmem_limit_bytes=_VMEM_LIMIT),
        )(x2, t2)
        out_flat = out2.reshape(-1)
        if pad:
            out_flat = out_flat[:n]
        return out_flat.reshape(orig_shape)

    # ---------------- Two-pass tiled path (global mean) ---------------- #
    tile_rows = max(1, block_elems // lanes)
    if tile_rows >= rows:
        tile_rows = rows                          # single full-dim block
    else:
        tile_rows = max(8, (tile_rows // 8) * 8)  # (8,128) alignment
    num_tiles = pl.cdiv(rows, tile_rows)
    needs_mask = num_tiles * tile_rows * lanes > n
    # Split tiles into two "parallel" chunks with independent partial sums so
    # pass 1 can use both TensorCores on dual-TC chips (v7x); single-TC chips
    # simply run the chunks back to back.
    num_chunks = 2 if (num_tiles >= 2 and num_tiles % 2 == 0) else 1
    tiles_per_chunk = num_tiles // num_chunks

    tile_spec = pl.BlockSpec((tile_rows, lanes),
                             lambda c, i: (c * tiles_per_chunk + i, 0))
    # Each chunk's partial sum lives in its own (8,128)-aligned block; every
    # element of the block carries the same partial (cheap scalar broadcast).
    psum_spec = pl.BlockSpec((8, 128), lambda c, i: (c, 0))

    kernel1 = functools.partial(
        _pass1_kernel, n_real=n, tile_rows=tile_rows, lanes=lanes,
        tiles_per_chunk=tiles_per_chunk, needs_mask=needs_mask, gamma=GAMMA)

    # Pass 1: modulator slab (kept in f32 so sub-f32 inputs are rounded only
    # once) + per-chunk BCE partial sums.
    mod, partials = pl.pallas_call(
        kernel1,
        out_shape=(jax.ShapeDtypeStruct((rows, lanes), jnp.float32),
                   jax.ShapeDtypeStruct((num_chunks * 8, 128), jnp.float32)),
        grid_spec=pltpu.PrefetchScalarGridSpec(
            num_scalar_prefetch=0,
            grid=(num_chunks, tiles_per_chunk),
            in_specs=[tile_spec, tile_spec],
            out_specs=(tile_spec, psum_spec)),
        compiler_params=pltpu.CompilerParams(
            dimension_semantics=("parallel", "arbitrary"),
            vmem_limit_bytes=_VMEM_LIMIT),
    )(x2, t2)

    # Tiny scalar epilogue: combine per-chunk partials, fold mean + alpha.
    scale = jnp.sum(partials[::8, 0]) * (ALPHA / n)

    if pad:
        # De-pad + rescale as one fused XLA elementwise op (no extra slice copy,
        # free to fuse with whatever consumes the loss downstream).
        out_flat = (mod.reshape(-1)[:n] * scale).astype(orig_dtype)
        return out_flat.reshape(orig_shape)

    # No padding: in-place Pallas rescale of the modulator slab.
    tile2 = pl.BlockSpec((tile_rows, lanes), lambda i: (i, 0))
    scale_spec = pl.BlockSpec((1, 1), lambda i: (0, 0))
    alias = {1: 0} if orig_dtype == jnp.float32 else {}
    out2 = pl.pallas_call(
        _pass2_kernel,
        out_shape=jax.ShapeDtypeStruct((rows, lanes), orig_dtype),
        grid_spec=pltpu.PrefetchScalarGridSpec(
            num_scalar_prefetch=0, grid=(num_tiles,),
            in_specs=[scale_spec, tile2],
            out_specs=tile2),
        input_output_aliases=alias,                # reuse the mod slab buffer
        compiler_params=pltpu.CompilerParams(
            dimension_semantics=("parallel",),     # shards across TCs on v7x
            vmem_limit_bytes=_VMEM_LIMIT),
    )(scale.reshape(1, 1).astype(jnp.float32), mod)
    return out2.reshape(orig_shape)


def _reference(x, target):
    """Pure-JAX reference (matches the PyTorch module)."""
    x = x.astype(jnp.float32)
    t = target.astype(jnp.float32)
    bce = jnp.maximum(x, 0.0) - x * t + jnp.log1p(jnp.exp(-jnp.abs(x)))
    return jnp.mean(bce) * ALPHA * jnp.abs(t - jax.nn.sigmoid(x)) ** GAMMA


if __name__ == "__main__":
    key = jax.random.PRNGKey(0)
    keys = jax.random.split(key, 12)

    def check(out, x, t, atol=1e-5, rtol=1e-4):
        ref = _reference(x, t)
        assert out.shape == x.shape and out.dtype == x.dtype
        err = jnp.max(jnp.abs(out.astype(jnp.float32) - ref))
        assert jnp.allclose(out.astype(jnp.float32), ref, atol=atol, rtol=rtol), \
            f"mismatch vs reference, max abs err = {err}"

    # Case A: NCHW logits, n % 512 == 0 -> fused single-block path, no padding.
    xA = jax.random.normal(keys[0], (2, 4, 16, 16), dtype=jnp.float32)
    tA = (jax.random.uniform(keys[1], (2, 4, 16, 16)) > 0.5).astype(jnp.float32)
    check(jax.block_until_ready(focal_loss(xA, tA)), xA, tA)

    # Case B: YOLO-ish 13x13 head, n % 128 != 0 -> fused path with masked tail.
    xB = jax.random.normal(keys[2], (2, 3, 13, 13), dtype=jnp.float32)
    tB = (jax.random.uniform(keys[3], (2, 3, 13, 13)) > 0.5).astype(jnp.float32)
    check(jax.block_until_ready(focal_loss(xB, tB)), xB, tB)

    # Case C: forced two-pass, divisible n, small tiles -> multi-tile grid with
    # two "parallel" chunks + per-chunk partials, Pallas in-place pass 2.
    xC = jax.random.normal(keys[4], (4, 8, 32, 32), dtype=jnp.float32)
    tC = (jax.random.uniform(keys[5], (4, 8, 32, 32)) > 0.5).astype(jnp.float32)
    check(jax.block_until_ready(
        focal_loss(xC, tC, force_two_pass=True, block_elems=8 * 512)), xC, tC)

    # Case D: forced two-pass, non-divisible n, odd tile count -> clean + masked
    # tile branches, fused XLA de-pad/rescale epilogue.
    xD = jax.random.normal(keys[6], (2, 4, 25, 25), dtype=jnp.float32)
    tD = (jax.random.uniform(keys[7], (2, 4, 25, 25)) > 0.5).astype(jnp.float32)
    check(jax.block_until_ready(
        focal_loss(xD, tD, force_two_pass=True, block_elems=8 * 128)), xD, tD)

    # Case E: forced two-pass, non-divisible n, even tile count -> dual-chunk
    # parallel split combined with the masked last tile.
    xE = jax.random.normal(keys[8], (2, 2, 25, 61), dtype=jnp.float32)
    tE = (jax.random.uniform(keys[9], (2, 2, 25, 61)) > 0.5).astype(jnp.float32)
    check(jax.block_until_ready(
        focal_loss(xE, tE, force_two_pass=True, block_elems=8 * 128)), xE, tE)

    # Case F: bfloat16 logits -> output stays bf16, single final rounding.
    xF = jax.random.normal(keys[10], (2, 4, 16, 16), dtype=jnp.bfloat16)
    tF = (jax.random.uniform(keys[11], (2, 4, 16, 16)) > 0.5).astype(jnp.float32)
    check(jax.block_until_ready(focal_loss(xF, tF)), xF, tF,
          atol=5e-3, rtol=2e-2)

    print("KERNEL_OK")
</pallas_src>

<mosaic_0001>
module attributes {stable_mosaic.version = 11 : i64} {
  func.func @_fused_kernel(%arg0: i32, %arg1: memref<4x512xf32, #tpu.memory_space<vmem>>, %arg2: memref<4x512xf32, #tpu.memory_space<vmem>>, %arg3: memref<4x512xf32, #tpu.memory_space<vmem>>) attributes {dimension_semantics = [#tpu.dimension_semantics<arbitrary>], iteration_bounds = array<i64: 1>, scalar_prefetch = 0 : i64, scratch_operands = 0 : i64, tpu.core_type = #tpu.core_type<tc>, window_params = [{pipeline_mode = #tpu.pipeline_mode<synchronous>, transform_indices = @transform_0, window_bounds = array<i64: 4, 512>}, {pipeline_mode = #tpu.pipeline_mode<synchronous>, transform_indices = @transform_1, window_bounds = array<i64: 4, 512>}, {pipeline_mode = #tpu.pipeline_mode<synchronous>, transform_indices = @transform_2, window_bounds = array<i64: 4, 512>}]} {
    %c0 = arith.constant 0 : index
    %c0_0 = arith.constant 0 : index
    %0 = vector.load %arg1[%c0, %c0_0] : memref<4x512xf32, #tpu.memory_space<vmem>>, vector<4x512xf32>
    %c0_1 = arith.constant 0 : index
    %c0_2 = arith.constant 0 : index
    %1 = vector.load %arg2[%c0_1, %c0_2] : memref<4x512xf32, #tpu.memory_space<vmem>>, vector<4x512xf32>
    %2 = math.absf %0 : vector<4x512xf32>
    %cst = arith.constant 0.000000e+00 : f32
    %3 = vector.broadcast %cst : f32 to vector<4x512xf32>
    %4 = arith.subf %3, %2 : vector<4x512xf32>
    %5 = math.exp %4 : vector<4x512xf32>
    %cst_3 = arith.constant 0.000000e+00 : f32
    %6 = vector.broadcast %cst_3 : f32 to vector<4x512xf32>
    %7 = arith.maximumf %0, %6 : vector<4x512xf32>
    %8 = arith.mulf %0, %1 : vector<4x512xf32>
    %9 = arith.subf %7, %8 : vector<4x512xf32>
    %10 = math.log1p %5 : vector<4x512xf32>
    %11 = arith.addf %9, %10 : vector<4x512xf32>
    %cst_4 = arith.constant 0.000000e+00 : f32
    %12 = vector.broadcast %cst_4 : f32 to vector<4x512xf32>
    %13 = arith.cmpf oge, %0, %12 : vector<4x512xf32>
    %cst_5 = arith.constant 1.000000e+00 : f32
    %14 = vector.broadcast %cst_5 : f32 to vector<4x512xf32>
    %15 = arith.select %13, %14, %5 : vector<4x512xi1>, vector<4x512xf32>
    %cst_6 = arith.constant 1.000000e+00 : f32
    %16 = vector.broadcast %cst_6 : f32 to vector<4x512xf32>
    %17 = arith.addf %16, %5 : vector<4x512xf32>
    %18 = arith.divf %15, %17 : vector<4x512xf32>
    %19 = arith.subf %1, %18 : vector<4x512xf32>
    %20 = arith.mulf %19, %19 : vector<4x512xf32>
    %21 = vector.shape_cast %11 : vector<4x512xf32> to vector<1x4x512xf32>
    %cst_7 = arith.constant dense<0.000000e+00> : vector<1xf32>
    %22 = vector.multi_reduction <add>, %21, %cst_7 [1, 2] : vector<1x4x512xf32> to vector<1xf32>
    %23 = vector.shape_cast %22 : vector<1xf32> to vector<1x1x1xf32>
    %24 = vector.extract %23[0, 0, 0] : f32 from vector<1x1x1xf32>
    %cst_8 = arith.constant 4.8828125E-4 : f32
    %25 = arith.mulf %24, %cst_8 : f32
    %26 = vector.broadcast %25 : f32 to vector<4x512xf32>
    %27 = arith.mulf %20, %26 : vector<4x512xf32>
    %c0_9 = arith.constant 0 : index
    %c0_10 = arith.constant 0 : index
    %28 = vector.load %arg3[%c0_9, %c0_10] : memref<4x512xf32, #tpu.memory_space<vmem>>, vector<4x512xf32>
    tpu.vector_store %arg3[%c0_9, %c0_10], %27 {strides = array<i32>} : memref<4x512xf32, #tpu.memory_space<vmem>>, vector<4x512xf32>,
    return
  }
  func.func @transform_0(%arg0: i32) -> (i32, i32) {
    %c0_i32 = arith.constant 0 : i32
    %c0_i32_0 = arith.constant 0 : i32
    %c0_i32_1 = arith.constant 0 : i32
    return %c0_i32, %c0_i32_0 : i32, i32
  }
  func.func @transform_1(%arg0: i32) -> (i32, i32) {
    %c0_i32 = arith.constant 0 : i32
    %c0_i32_0 = arith.constant 0 : i32
    %c0_i32_1 = arith.constant 0 : i32
    return %c0_i32, %c0_i32_0 : i32, i32
  }
  func.func @transform_2(%arg0: i32) -> (i32, i32) {
    %c0_i32 = arith.constant 0 : i32
    %c0_i32_0 = arith.constant 0 : i32
    %c0_i32_1 = arith.constant 0 : i32
    return %c0_i32, %c0_i32_0 : i32, i32
  }
}

</mosaic_0001>

<llo_original>
// kernel: focal_loss.1
$region0: #{focal_loss.1}
  #allocation0 [shape = 'u32[]', space=smem, size = 0x4, offset = 0x4, fixed_abs, tag = 'smem constant byte address 0x4 - core index']
  #allocation1 [shape = 'u32[144,128]{1,0:T(1,128)}', space=vmem, size = 0x12000, scoped, tag = 'internal scratch']
  %s0 = inlined_call_operand.vmem [shape: f32[4,512], index: 0, kind: input, shape index: {}]
  %s1 = inlined_call_operand.vmem [shape: f32[4,512], index: 1, kind: input, shape index: {}]
  %s2 = inlined_call_operand.vmem [shape: f32[4,512], index: 2, kind: output, shape index: {}]
  %s3 = sld [smem:[#allocation0]]
  $region18: #{focal_loss.1} parent=0
    _
  %s5 = ssub.s32 1, %s3
  %s6 = scalar_select 0, %s5, %s3
  // Predicated region
  $region2: #{focal_loss.1} parent=0 // pred_check
    _
  $region3: #{focal_loss.1} parent=0 // pred_check_branch
    %8 = sbr.rel (0) target = $region5
  $region4: #{focal_loss.1} parent=0 // pred_region
    _
  $region5: #{focal_loss.1} parent=0 // pred_fallthru
    _
  // Predicated region
  $region6: #{focal_loss.1} parent=0 // pred_check
    _
  $region7: #{focal_loss.1} parent=0 // pred_check_branch
    %10 = sbr.rel (0) target = $region9
  $region8: #{focal_loss.1} parent=0 // pred_region
    _
  $region9: #{focal_loss.1} parent=0 // pred_fallthru
    _
  %v11 = vld [vmem:[%s0] sm:$0xff]
  %v12 = vld [vmem:[%s0 + $0x8] sm:$0xff]
  %v13 = vld [vmem:[%s1] sm:$0xff]
  %v14 = vld [vmem:[%s1 + $0x8] sm:$0xff]
  %v15 = vand.u32 2147483647, %v11
  %v16 = vand.u32 2147483647, %v12
  %v17 = vsub.f32 0.0, %v15
  %v18 = vsub.f32 0.0, %v16
  %v19 = vmul.f32 %v17, 1.442695
  %v20 = vpow.pop %v19
  %v21 = vmul.f32 %v18, 1.442695
  %v22 = vpow.pop %v21
  %v23 = vmax.f32 %v11, 0.0
  %v24 = vmax.f32 %v12, 0.0
  %v25 = vmul.f32 %v11, %v13
  %v26 = vmul.f32 %v12, %v14
  %v27 = vsub.f32 %v23, %v25
  %v28 = vsub.f32 %v24, %v26
  %v29 = vadd.f32 %v20, 1.0
  %v30 = vlog2.pop %v29
  %v31 = vmul.f32 %v30, 0.6931472
  %v32 = vmul.f32 -0.5, %v20
  %v33 = vadd.f32 %v32, 1.0
  %v34 = vmul.f32 %v33, %v20
  %v35 = vand.u32 2147483647, %v20
  %vm36 = vcmp.lt.f32.partialorder %v35, 0.0004427343
  %v37 = vsel %vm36, %v34, %v31
  %v38 = vadd.f32 %v22, 1.0
  %v39 = vlog2.pop %v38
  %v40 = vmul.f32 %v39, 0.6931472
  %v41 = vmul.f32 -0.5, %v22
  %v42 = vadd.f32 %v41, 1.0
  %v43 = vmul.f32 %v42, %v22
  %v44 = vand.u32 2147483647, %v22
  %vm45 = vcmp.lt.f32.partialorder %v44, 0.0004427343
  %v46 = vsel %vm45, %v43, %v40
  %v47 = vadd.f32 %v27, %v37
  %v48 = vadd.f32 %v28, %v46
  %vm49 = vcmp.ge.f32.partialorder %v11, 0.0
  %vm50 = vcmp.ge.f32.partialorder %v12, 0.0
  %v51 = vsel %vm49, 1.0, %v20
  %v52 = vsel %vm50, 1.0, %v22
  %v53 = vadd.f32 %v20, 1.0
  %v54 = vadd.f32 %v22, 1.0
  %v55 = vrcp.pop %v53
  %v56 = vmul.f32 %v51, %v55
  %v57 = vrcp.pop %v54
  %v58 = vmul.f32 %v52, %v57
  %v59 = vsub.f32 %v13, %v56
  %v60 = vsub.f32 %v14, %v58
  %v61 = vmul.f32 %v59, %v59
  %v62 = vmul.f32 %v60, %v60
  %v65 = vcombine.high %v47, %v47
  %v66 = vcombine.high %v48, %v48
  %vm69 = vcmask 1043456
  %v70 = vsel %vm69, %v47, 0.0
  %v71 = vsel %vm69, %v65, 0.0
  %v72 = vadd.f32 %v70, %v71
  %v73 = vsel %vm69, %v48, 0.0
  %v74 = vadd.f32 %v72, %v73
  %v75 = vsel %vm69, %v66, 0.0
  %v76 = vadd.f32 %v74, %v75
  %77 = vadd.xlane.f32.xlu0 %v76
  %v78 = vpop.xlane.xlu0 %77
  %v79 = vrot.slane %v78, 4
  %v80 = vadd.f32 %v78, %v79
  %v81 = vrot.slane %v80, 2
  %v82 = vadd.f32 %v80, %v81
  %v83 = vrot.slane %v82, 1
  %v84 = vadd.f32 %v82, %v83
  %s85 = vtos %v84
  %s86 = smul.f32 %s85, 0.00048828125
  %v87 = vstv %s86
  %v88 = vmul.f32 %v61, %v87
  %v89 = vmul.f32 %v62, %v87
  %90 = vst [vmem:[%s2] sm:$0xff] %v88
  %91 = vst [vmem:[%s2 + $0x8] sm:$0xff] %v89
  // Predicated region
  $region10: #{focal_loss.1} parent=0 // pred_check
    _
  $region11: #{focal_loss.1} parent=0 // pred_check_branch
    %93 = sbr.rel (0) target = $region13
  $region12: #{focal_loss.1} parent=0 // pred_region
    _
  $region13: #{focal_loss.1} parent=0 // pred_fallthru
    _
  // Predicated region
  $region14: #{focal_loss.1} parent=0 // pred_check
    _
  $region15: #{focal_loss.1} parent=0 // pred_check_branch
    %95 = sbr.rel (0) target = $region17
  $region16: #{focal_loss.1} parent=0 // pred_region
    _
  $region17: #{focal_loss.1} parent=0 // pred_fallthru
    _

</llo_original>
